<compile_context>
chip_gen: v6e
topology: v6e:2x2x1
jax: 0.10.0
libtpu: 0.0.40
codegen_flags: <defaults>
</compile_context>

<pallas_src>
import jax
import jax.numpy as jnp
from jax.experimental import pallas as pl
from jax.experimental.pallas import tpu as pltpu

EPS = 1e-5


# --------------------------------------------------------------------------
# Kernels
# --------------------------------------------------------------------------
def _bin_fused_kernel(rho_ref, x_ref, g_ref, b_ref, o_ref):
    """Single-pass BIN: x block covers full batch and full spatial extent."""
    x = x_ref[...]                                  # (N, Cb, HW), input dtype
    n, cb, hw = x.shape
    xf = x.astype(jnp.float32)

    rho = rho_ref[0]
    one_minus_rho = 1.0 - rho

    # One reduction pass over HW: sum and sum of squares per (n, c).
    s1 = jnp.sum(xf, axis=2, keepdims=True)         # (N, Cb, 1)
    s2 = jnp.sum(xf * xf, axis=2, keepdims=True)    # (N, Cb, 1)

    inv_hw = jnp.float32(1.0 / hw)
    mean_in = s1 * inv_hw
    var_in = jnp.maximum(s2 * inv_hw - mean_in * mean_in, 0.0)

    # Batch-norm stats from the instance partial sums (no second full pass).
    inv_nhw = jnp.float32(1.0 / (n * hw))
    mean_bn = jnp.sum(s1, axis=0, keepdims=True) * inv_nhw          # (1, Cb, 1)
    var_bn = jnp.maximum(
        jnp.sum(s2, axis=0, keepdims=True) * inv_nhw - mean_bn * mean_bn, 0.0)

    # rsqrt on the tiny stats tensors only (EUP, effectively free).
    rstd_in = jax.lax.rsqrt(var_in + EPS)           # (N, Cb, 1)
    rstd_bn = jax.lax.rsqrt(var_bn + EPS)           # (1, Cb, 1)

    gamma = g_ref[...].astype(jnp.float32)          # (1, Cb, 1)
    beta = b_ref[...].astype(jnp.float32)           # (1, Cb, 1)

    # Fold both normalizations + affine into one per-element FMA.
    a_bn = rho * rstd_bn
    a_in = one_minus_rho * rstd_in
    scale = gamma * (a_bn + a_in)                                   # (N, Cb, 1)
    shift = beta - gamma * (a_bn * mean_bn + a_in * mean_in)        # (N, Cb, 1)

    if x.dtype == jnp.float32:
        o_ref[...] = (xf * scale + shift).astype(o_ref.dtype)
    else:
        # Sub-f32 inputs: do the dominant per-element pass in the input dtype
        # (bf16 VALU on v6e/v7x), keeping only the stats math in f32.
        o_ref[...] = (x * scale.astype(x.dtype)
                      + shift.astype(x.dtype)).astype(o_ref.dtype)


def _bin_stats_kernel(x_ref, s1_ref, s2_ref):
    """Two-pass path, pass 1: accumulate sum / sumsq over HW tiles."""
    h = pl.program_id(1)
    xf = x_ref[...].astype(jnp.float32)             # (N, Cb, HWb)

    @pl.when(h == 0)
    def _():
        s1_ref[...] = jnp.zeros_like(s1_ref)
        s2_ref[...] = jnp.zeros_like(s2_ref)

    s1_ref[...] += jnp.sum(xf, axis=2, keepdims=True)
    s2_ref[...] += jnp.sum(xf * xf, axis=2, keepdims=True)


def _bin_apply_kernel(x_ref, scale_ref, shift_ref, o_ref):
    """Two-pass path, pass 2: out = x * scale + shift (per (n, c))."""
    x = x_ref[...]                                  # (N, Cb, HWb)
    scale = scale_ref[...]                          # (N, Cb, 1) f32
    shift = shift_ref[...]
    if x.dtype != jnp.float32:
        scale = scale.astype(x.dtype)
        shift = shift.astype(x.dtype)
    o_ref[...] = (x * scale + shift).astype(o_ref.dtype)


# --------------------------------------------------------------------------
# Tiling helpers
# --------------------------------------------------------------------------
def _sublane_step(dtype):
    """Sublane packing step: 8 for f32, 16 for bf16, 32 for int8/fp8."""
    return max(8, 32 // jnp.dtype(dtype).itemsize)


def _vmem_limit_bytes():
    """Explicit scoped-VMEM limit: ~3/4 of physical (96 MiB v5e/v6e, 48 MiB v7x)."""
    cap = 64 << 20  # conservative default (v7x physical VMEM)
    try:
        info = pltpu.get_tpu_info()
        c = getattr(info, "vmem_capacity_bytes", None)
        if c:
            cap = int(c)
    except Exception:
        pass
    cap = min(cap, 128 << 20)
    return max((cap * 3) // 4, 24 << 20)


def _fused_bytes_per_c(N, HW, itemsize):
    # 2x in + 2x out double-buffered tiles + ~2 f32 in-kernel temporaries
    # (f32 cast / product / FMA result) per channel of block.
    return N * HW * (4 * itemsize + 2 * 4)


def _pick_block(cands, C):
    """Prefer an even number of grid steps (v7x: two TCs) among >=4-step picks."""
    even = [c for c in cands if (C // c) % 2 == 0 and C // c >= 4]
    pool = even if even else cands
    return max(pool)


def _choose_c_block(N, C, HW, itemsize, step, budget):
    """Channel block for the fused single-pass kernel, or None if it can't fit."""
    bytes_per_c = _fused_bytes_per_c(N, HW, itemsize)
    cands = [c for c in range(step, C + 1, step) if C % c == 0]
    if not cands:
        cands = [C]  # tiny / awkward C: full-extent channel block
    fitting = [c for c in cands if c * bytes_per_c <= budget]
    if not fitting:
        return None  # fall back to the two-pass path
    # Tier 1: modest tiles (<= 8 MiB of x) with >= 4 grid steps so the pipeline
    # fill/drain is amortized; Tier 2: >= 2 steps; Tier 3: anything that fits.
    tile_cap = 8 << 20
    tier_a = [c for c in fitting
              if N * c * HW * itemsize <= tile_cap and C // c >= 4]
    tier_b = [c for c in fitting if C // c >= 2]
    tier = tier_a or tier_b or fitting
    return _pick_block(tier, C)


def _choose_two_pass_blocks(N, C, HW, itemsize, step, budget):
    """(c_block, hw_block) for the two-pass path."""
    per_elem = 4 * itemsize + 2 * 4  # double-buffered in/out + f32 temps
    c_cands = [c for c in range(step, C + 1, step) if C % c == 0]
    if not c_cands:
        c_cands = [c for c in range(8, C + 1, 8) if C % c == 0] or [C]
    c_b = min(c_cands)
    hw_cands = [h for h in range(128, HW, 128) if HW % h == 0]
    if not hw_cands:
        # TODO(synk): HW with no multiple-of-128 proper divisor; full-HW block
        # (only reachable for shapes that shouldn't hit the two-pass path).
        hw_cands = [HW]
    fitting = [h for h in hw_cands if N * c_b * h * per_elem <= budget]
    hw_b = max(fitting) if fitting else min(hw_cands)
    return c_b, hw_b


# --------------------------------------------------------------------------
# Wrapper
# --------------------------------------------------------------------------
def bin_forward(x, gamma, beta, rho, force_two_pass=False):
    """x: (N, C, H, W). gamma/beta: (1, C, 1, 1). rho: scalar."""
    N, C, H, W = x.shape
    HW = H * W

    x3 = x.reshape(N, C, HW)
    g3 = gamma.reshape(1, C, 1)
    b3 = beta.reshape(1, C, 1)

    itemsize = jnp.dtype(x.dtype).itemsize
    step = _sublane_step(x.dtype)
    vmem_limit = _vmem_limit_bytes()
    budget = vmem_limit - (4 << 20)  # headroom for Mosaic internal scratch

    c_block = None if force_two_pass else _choose_c_block(
        N, C, HW, itemsize, step, budget)

    if c_block is not None:
        # ---------------- fused single-pass path ----------------
        rho_s = jnp.asarray(rho, jnp.float32).reshape(1)
        out3 = pl.pallas_call(
            _bin_fused_kernel,
            out_shape=jax.ShapeDtypeStruct((N, C, HW), x.dtype),
            grid_spec=pltpu.PrefetchScalarGridSpec(
                num_scalar_prefetch=0,
                grid=(C // c_block,),
                in_specs=[
                    pl.BlockSpec(memory_space=pltpu.MemorySpace.SMEM),    # rho
                    pl.BlockSpec((N, c_block, HW), lambda j: (0, j, 0)),  # x
                    pl.BlockSpec((1, c_block, 1), lambda j: (0, j, 0)),   # gamma
                    pl.BlockSpec((1, c_block, 1), lambda j: (0, j, 0)),   # beta
                ],
                out_specs=pl.BlockSpec((N, c_block, HW), lambda j: (0, j, 0)),
            ),
            compiler_params=pltpu.CompilerParams(
                dimension_semantics=("parallel",),
                vmem_limit_bytes=vmem_limit,
            ),
        )(rho_s, x3, g3, b3)
        return out3.reshape(N, C, H, W)

    # ---------------- two-pass path (large N*HW) ----------------
    c_b, hw_b = _choose_two_pass_blocks(N, C, HW, itemsize, step, budget)
    grid = (C // c_b, pl.cdiv(HW, hw_b))

    # Pass 1: accumulate per-(n, c) sum and sum-of-squares across HW tiles.
    s1, s2 = pl.pallas_call(
        _bin_stats_kernel,
        out_shape=(jax.ShapeDtypeStruct((N, C, 1), jnp.float32),
                   jax.ShapeDtypeStruct((N, C, 1), jnp.float32)),
        grid_spec=pltpu.PrefetchScalarGridSpec(
            num_scalar_prefetch=0,
            grid=grid,
            in_specs=[pl.BlockSpec((N, c_b, hw_b), lambda j, h: (0, j, h))],
            out_specs=(pl.BlockSpec((N, c_b, 1), lambda j, h: (0, j, 0)),
                       pl.BlockSpec((N, c_b, 1), lambda j, h: (0, j, 0))),
        ),
        compiler_params=pltpu.CompilerParams(
            dimension_semantics=("parallel", "arbitrary"),
            vmem_limit_bytes=vmem_limit,
        ),
    )(x3)

    # Tiny (N, C) stats math in plain XLA (negligible vs the HBM-bound passes).
    rho_f = jnp.asarray(rho, jnp.float32)
    inv_hw = jnp.float32(1.0 / HW)
    inv_nhw = jnp.float32(1.0 / (N * HW))
    mean_in = s1 * inv_hw
    var_in = jnp.maximum(s2 * inv_hw - mean_in * mean_in, 0.0)
    mean_bn = jnp.sum(s1, axis=0, keepdims=True) * inv_nhw
    var_bn = jnp.maximum(
        jnp.sum(s2, axis=0, keepdims=True) * inv_nhw - mean_bn * mean_bn, 0.0)
    rstd_in = jax.lax.rsqrt(var_in + EPS)
    rstd_bn = jax.lax.rsqrt(var_bn + EPS)
    gf = g3.astype(jnp.float32)
    bf = b3.astype(jnp.float32)
    a_bn = rho_f * rstd_bn
    a_in = (1.0 - rho_f) * rstd_in
    scale = gf * (a_bn + a_in)                                      # (N, C, 1)
    shift = bf - gf * (a_bn * mean_bn + a_in * mean_in)             # (N, C, 1)

    # Pass 2: re-read x and apply the fused FMA.
    out3 = pl.pallas_call(
        _bin_apply_kernel,
        out_shape=jax.ShapeDtypeStruct((N, C, HW), x.dtype),
        grid_spec=pltpu.PrefetchScalarGridSpec(
            num_scalar_prefetch=0,
            grid=grid,
            in_specs=[
                pl.BlockSpec((N, c_b, hw_b), lambda j, h: (0, j, h)),   # x
                pl.BlockSpec((N, c_b, 1), lambda j, h: (0, j, 0)),      # scale
                pl.BlockSpec((N, c_b, 1), lambda j, h: (0, j, 0)),      # shift
            ],
            out_specs=pl.BlockSpec((N, c_b, hw_b), lambda j, h: (0, j, h)),
        ),
        compiler_params=pltpu.CompilerParams(
            dimension_semantics=("parallel", "parallel"),
            vmem_limit_bytes=vmem_limit,
        ),
    )(x3, scale, shift)
    return out3.reshape(N, C, H, W)


# --------------------------------------------------------------------------
# Reference (matches the PyTorch training-mode branch)
# --------------------------------------------------------------------------
def bin_reference(x, gamma, beta, rho, eps=EPS):
    mean_bn = jnp.mean(x, axis=(0, 2, 3), keepdims=True)
    var_bn = jnp.mean((x - mean_bn) ** 2, axis=(0, 2, 3), keepdims=True)
    xhat_bn = (x - mean_bn) / jnp.sqrt(var_bn + eps)
    mean_in = jnp.mean(x, axis=(2, 3), keepdims=True)
    var_in = jnp.mean((x - mean_in) ** 2, axis=(2, 3), keepdims=True)
    xhat_in = (x - mean_in) / jnp.sqrt(var_in + eps)
    return gamma * (rho * xhat_bn + (1.0 - rho) * xhat_in) + beta


if __name__ == "__main__":
    key = jax.random.PRNGKey(0)
    rho = jnp.float32(0.5)

    # --- test 1: fused single-pass path, params matching BIN.__init__ ---
    N, C, H, W = 2, 4, 16, 16
    x = jax.random.normal(key, (N, C, H, W), dtype=jnp.float32)
    gamma = jnp.ones((1, C, 1, 1), jnp.float32)
    beta = jnp.zeros((1, C, 1, 1), jnp.float32)

    out = jax.block_until_ready(bin_forward(x, gamma, beta, rho))
    ref = bin_reference(x, gamma, beta, rho)
    assert out.shape == (N, C, H, W)
    assert jnp.allclose(out, ref, atol=1e-4, rtol=1e-4), "fused path mismatch"

    # --- test 2: force the large-input two-pass path at a small shape ---
    k1, k2, k3 = jax.random.split(jax.random.PRNGKey(1), 3)
    N2, C2, H2, W2 = 2, 8, 16, 16
    x2 = jax.random.normal(k1, (N2, C2, H2, W2), dtype=jnp.float32)
    gamma2 = 1.0 + 0.1 * jax.random.normal(k2, (1, C2, 1, 1), dtype=jnp.float32)
    beta2 = 0.1 * jax.random.normal(k3, (1, C2, 1, 1), dtype=jnp.float32)

    out2 = jax.block_until_ready(
        bin_forward(x2, gamma2, beta2, rho, force_two_pass=True))
    ref2 = bin_reference(x2, gamma2, beta2, rho)
    assert out2.shape == (N2, C2, H2, W2)
    assert jnp.allclose(out2, ref2, atol=1e-4, rtol=1e-4), "two-pass mismatch"

    print("KERNEL_OK")
</pallas_src>

<mosaic_0001>
module attributes {stable_mosaic.version = 11 : i64} {
  func.func @_bin_fused_kernel(%arg0: i32, %arg1: memref<1xf32, #tpu.memory_space<smem>>, %arg2: memref<2x4x256xf32, #tpu.memory_space<vmem>>, %arg3: memref<1x4x1xf32, #tpu.memory_space<vmem>>, %arg4: memref<1x4x1xf32, #tpu.memory_space<vmem>>, %arg5: memref<2x4x256xf32, #tpu.memory_space<vmem>>) attributes {dimension_semantics = [#tpu.dimension_semantics<parallel>], iteration_bounds = array<i64: 1>, scalar_prefetch = 0 : i64, scratch_operands = 0 : i64, tpu.core_type = #tpu.core_type<tc>, window_params = [{transform_indices = @transform_0, window_bounds = array<i64: 1>}, {transform_indices = @transform_1, window_bounds = array<i64: 2, 4, 256>}, {transform_indices = @transform_2, window_bounds = array<i64: 1, 4, 1>}, {transform_indices = @transform_3, window_bounds = array<i64: 1, 4, 1>}, {transform_indices = @transform_4, window_bounds = array<i64: 2, 4, 256>}]} {
    %c0 = arith.constant 0 : index
    %c0_0 = arith.constant 0 : index
    %c0_1 = arith.constant 0 : index
    %0 = vector.load %arg2[%c0, %c0_0, %c0_1] : memref<2x4x256xf32, #tpu.memory_space<vmem>>, vector<2x4x256xf32>
    %c0_2 = arith.constant 0 : index
    %1 = memref.load %arg1[%c0_2] : memref<1xf32, #tpu.memory_space<smem>>
    %cst = arith.constant 1.000000e+00 : f32
    %2 = arith.subf %cst, %1 : f32
    %cst_3 = arith.constant dense<0.000000e+00> : vector<2x4xf32>
    %3 = vector.multi_reduction <add>, %0, %cst_3 [2] : vector<2x4x256xf32> to vector<2x4xf32>
    %4 = vector.shape_cast %3 : vector<2x4xf32> to vector<2x4x1xf32>
    %5 = arith.mulf %0, %0 : vector<2x4x256xf32>
    %cst_4 = arith.constant dense<0.000000e+00> : vector<2x4xf32>
    %6 = vector.multi_reduction <add>, %5, %cst_4 [2] : vector<2x4x256xf32> to vector<2x4xf32>
    %7 = vector.shape_cast %6 : vector<2x4xf32> to vector<2x4x1xf32>
    %cst_5 = arith.constant 3.906250e-03 : f32
    %8 = vector.broadcast %cst_5 : f32 to vector<2x4x1xf32>
    %9 = arith.mulf %4, %8 : vector<2x4x1xf32>
    %cst_6 = arith.constant 3.906250e-03 : f32
    %10 = vector.broadcast %cst_6 : f32 to vector<2x4x1xf32>
    %11 = arith.mulf %7, %10 : vector<2x4x1xf32>
    %12 = arith.mulf %9, %9 : vector<2x4x1xf32>
    %13 = arith.subf %11, %12 : vector<2x4x1xf32>
    %cst_7 = arith.constant 0.000000e+00 : f32
    %14 = vector.broadcast %cst_7 : f32 to vector<2x4x1xf32>
    %15 = arith.maximumf %13, %14 : vector<2x4x1xf32>
    %cst_8 = arith.constant dense<0.000000e+00> : vector<4x1xf32>
    %16 = vector.multi_reduction <add>, %4, %cst_8 [0] : vector<2x4x1xf32> to vector<4x1xf32>
    %17 = vector.shape_cast %16 : vector<4x1xf32> to vector<1x4x1xf32>
    %cst_9 = arith.constant 0.001953125 : f32
    %18 = vector.broadcast %cst_9 : f32 to vector<1x4x1xf32>
    %19 = arith.mulf %17, %18 : vector<1x4x1xf32>
    %cst_10 = arith.constant dense<0.000000e+00> : vector<4x1xf32>
    %20 = vector.multi_reduction <add>, %7, %cst_10 [0] : vector<2x4x1xf32> to vector<4x1xf32>
    %21 = vector.shape_cast %20 : vector<4x1xf32> to vector<1x4x1xf32>
    %cst_11 = arith.constant 0.001953125 : f32
    %22 = vector.broadcast %cst_11 : f32 to vector<1x4x1xf32>
    %23 = arith.mulf %21, %22 : vector<1x4x1xf32>
    %24 = arith.mulf %19, %19 : vector<1x4x1xf32>
    %25 = arith.subf %23, %24 : vector<1x4x1xf32>
    %cst_12 = arith.constant 0.000000e+00 : f32
    %26 = vector.broadcast %cst_12 : f32 to vector<1x4x1xf32>
    %27 = arith.maximumf %25, %26 : vector<1x4x1xf32>
    %cst_13 = arith.constant 9.99999974E-6 : f32
    %28 = vector.broadcast %cst_13 : f32 to vector<2x4x1xf32>
    %29 = arith.addf %15, %28 : vector<2x4x1xf32>
    %30 = math.rsqrt %29 : vector<2x4x1xf32>
    %cst_14 = arith.constant 9.99999974E-6 : f32
    %31 = vector.broadcast %cst_14 : f32 to vector<1x4x1xf32>
    %32 = arith.addf %27, %31 : vector<1x4x1xf32>
    %33 = math.rsqrt %32 : vector<1x4x1xf32>
    %c0_15 = arith.constant 0 : index
    %c0_16 = arith.constant 0 : index
    %c0_17 = arith.constant 0 : index
    %34 = vector.load %arg3[%c0_15, %c0_16, %c0_17] : memref<1x4x1xf32, #tpu.memory_space<vmem>>, vector<1x4x1xf32>
    %c0_18 = arith.constant 0 : index
    %c0_19 = arith.constant 0 : index
    %c0_20 = arith.constant 0 : index
    %35 = vector.load %arg4[%c0_18, %c0_19, %c0_20] : memref<1x4x1xf32, #tpu.memory_space<vmem>>, vector<1x4x1xf32>
    %36 = vector.broadcast %1 : f32 to vector<1x4x1xf32>
    %37 = arith.mulf %36, %33 : vector<1x4x1xf32>
    %38 = vector.broadcast %2 : f32 to vector<2x4x1xf32>
    %39 = arith.mulf %38, %30 : vector<2x4x1xf32>
    %40 = vector.broadcast %37 : vector<1x4x1xf32> to vector<2x4x1xf32>
    %41 = arith.addf %40, %39 : vector<2x4x1xf32>
    %42 = vector.broadcast %34 : vector<1x4x1xf32> to vector<2x4x1xf32>
    %43 = arith.mulf %42, %41 : vector<2x4x1xf32>
    %44 = arith.mulf %37, %19 : vector<1x4x1xf32>
    %45 = arith.mulf %39, %9 : vector<2x4x1xf32>
    %46 = vector.broadcast %44 : vector<1x4x1xf32> to vector<2x4x1xf32>
    %47 = arith.addf %46, %45 : vector<2x4x1xf32>
    %48 = vector.broadcast %34 : vector<1x4x1xf32> to vector<2x4x1xf32>
    %49 = arith.mulf %48, %47 : vector<2x4x1xf32>
    %50 = vector.broadcast %35 : vector<1x4x1xf32> to vector<2x4x1xf32>
    %51 = arith.subf %50, %49 : vector<2x4x1xf32>
    %52 = vector.broadcast %43 : vector<2x4x1xf32> to vector<2x4x256xf32>
    %53 = arith.mulf %0, %52 : vector<2x4x256xf32>
    %54 = vector.broadcast %51 : vector<2x4x1xf32> to vector<2x4x256xf32>
    %55 = arith.addf %53, %54 : vector<2x4x256xf32>
    %c0_21 = arith.constant 0 : index
    %c0_22 = arith.constant 0 : index
    %c0_23 = arith.constant 0 : index
    %56 = vector.load %arg5[%c0_21, %c0_22, %c0_23] : memref<2x4x256xf32, #tpu.memory_space<vmem>>, vector<2x4x256xf32>
    tpu.vector_store %arg5[%c0_21, %c0_22, %c0_23], %55 {strides = array<i32>} : memref<2x4x256xf32, #tpu.memory_space<vmem>>, vector<2x4x256xf32>,
    return
  }
  func.func @transform_0(%arg0: i32) -> i32 {
    %c0_i32 = arith.constant 0 : i32
    %c0_i32_0 = arith.constant 0 : i32
    return %c0_i32 : i32
  }
  func.func @transform_1(%arg0: i32) -> (i32, i32, i32) {
    %c0_i32 = arith.constant 0 : i32
    %c0_i32_0 = arith.constant 0 : i32
    %c0_i32_1 = arith.constant 0 : i32
    return %c0_i32, %arg0, %c0_i32_0 : i32, i32, i32
  }
  func.func @transform_2(%arg0: i32) -> (i32, i32, i32) {
    %c0_i32 = arith.constant 0 : i32
    %c0_i32_0 = arith.constant 0 : i32
    %c0_i32_1 = arith.constant 0 : i32
    return %c0_i32, %arg0, %c0_i32_0 : i32, i32, i32
  }
  func.func @transform_3(%arg0: i32) -> (i32, i32, i32) {
    %c0_i32 = arith.constant 0 : i32
    %c0_i32_0 = arith.constant 0 : i32
    %c0_i32_1 = arith.constant 0 : i32
    return %c0_i32, %arg0, %c0_i32_0 : i32, i32, i32
  }
  func.func @transform_4(%arg0: i32) -> (i32, i32, i32) {
    %c0_i32 = arith.constant 0 : i32
    %c0_i32_0 = arith.constant 0 : i32
    %c0_i32_1 = arith.constant 0 : i32
    return %c0_i32, %arg0, %c0_i32_0 : i32, i32, i32
  }
}

</mosaic_0001>

<llo_original>
// kernel: tpu_custom_call.1
$region0: #{tpu_custom_call.1}
  #allocation0 [shape = 'u32[]', space=smem, size = 0x4, offset = 0x4, fixed_abs, tag = 'smem constant byte address 0x4 - core index']
  #allocation1 [shape = 'u32[144,128]{1,0:T(1,128)}', space=vmem, size = 0x12000, scoped, tag = 'internal scratch']
  #allocation2 [shape = 'f32[1]{0:T(128)S(6)}', space=smem, size = 0x200, scoped, tag = 'scoped memory for tpu_custom_call.1']
  %s0 = inlined_call_operand.<no memory space> [shape: f32[1], index: 0, kind: input, shape index: {}]
  %s1 = inlined_call_operand.hbm [shape: f32[2,4,256], index: 1, kind: input, shape index: {}]
  %s2 = inlined_call_operand.vmem [shape: f32[1,4,1], index: 2, kind: input, shape index: {}]
  %s3 = inlined_call_operand.vmem [shape: f32[1,4,1], index: 3, kind: input, shape index: {}]
  %s4 = inlined_call_operand.hbm [shape: f32[2,4,256], index: 4, kind: output, shape index: {}]
  %s5 = sld [smem:[#allocation0]]
  $region30: #{tpu_custom_call.1} parent=0
    _
  %s7 = ssub.s32 1, %s5
  %s8 = scalar_select 0, %s7, %s5
  %9 = sst [smem:[#allocation2]] %s0
  $region1: #{tpu_custom_call.1} parent=0
    #allocation3 [shape = 'u8[8192]{0}', space=vmem, size = 0x2000, scoped, tag = 'input window, operand 1, single buffered']
    #allocation4 [shape = 's32[1]{0}', space=sflag, size = 0x4, scoped, tag = 'scoped memory for tpu_custom_call.1']
    #allocation5 [shape = 's32[1]{0}', space=sflag, size = 0x4, scoped, tag = 'scoped memory for tpu_custom_call.1']
    #allocation6 [shape = 'u8[8192]{0}', space=vmem, size = 0x2000, scoped, tag = 'output window, operand 0, single buffered']
    %10 = vsyncpa [#allocation4], 0
    %11 = vsyncpa [#allocation5], 0
    // Predicated region
    $region2: #{tpu_custom_call.1} parent=1 // pred_check
      _
    $region3: #{tpu_custom_call.1} parent=1 // pred_check_branch
      %13 = sbr.rel (0) target = $region5
    $region4: #{tpu_custom_call.1} parent=1 // pred_region
      _
    $region5: #{tpu_custom_call.1} parent=1 // pred_fallthru
      _
    // Predicated region
    $region6: #{tpu_custom_call.1} parent=1 // pred_check
      _
    $region7: #{tpu_custom_call.1} parent=1 // pred_check_branch
      %15 = sbr.rel (0) target = $region9
    $region8: #{tpu_custom_call.1} parent=1 // pred_region
      %s17 = ssub.s32 256, 256
      %18 = vsyncadd [#allocation4], %s17
      %s19 = sshll.u32 [#allocation3], 4
      %s20 = int_to_ptr.vmem [resolvable:$true] %s19
      %25 = dma.hbm_to_vmem [thread:$0]  %s1, 256, %s20, [#allocation4], 128, 128, 8
    $region9: #{tpu_custom_call.1} parent=1 // pred_fallthru
      _
    // Predicated region
    $region10: #{tpu_custom_call.1} parent=1 // pred_check
      _
    $region11: #{tpu_custom_call.1} parent=1 // pred_check_branch
      %27 = sbr.rel (0) target = $region13
    $region12: #{tpu_custom_call.1} parent=1 // pred_region
      _
    $region13: #{tpu_custom_call.1} parent=1 // pred_fallthru
      _
    // Predicated region
    $region14: #{tpu_custom_call.1} parent=1 // pred_check
      _
    $region15: #{tpu_custom_call.1} parent=1 // pred_check_branch
      %29 = sbr.rel (0) target = $region17
    $region16: #{tpu_custom_call.1} parent=1 // pred_region
      _
    $region17: #{tpu_custom_call.1} parent=1 // pred_fallthru
      _
    // Predicated region
    $region18: #{tpu_custom_call.1} parent=1 // pred_check
      _
    $region19: #{tpu_custom_call.1} parent=1 // pred_check_branch
      %31 = sbr.rel (0) target = $region21
    $region20: #{tpu_custom_call.1} parent=1 // pred_region
      %32 = dma.done [#allocation4], 256
    $region21: #{tpu_custom_call.1} parent=1 // pred_fallthru
      _
    %v33 = vld [vmem:[#allocation3] sm:$0xff]
    %v34 = vld [vmem:[#allocation3 + $0x8] sm:$0xff]
    %s35 = sld [smem:[#allocation2]]
    %s36 = ssub.f32 1.0, %s35
    %v39 = vcombine.high %v33, %v33
    %v40 = vcombine.high %v34, %v34
    %vm43 = vcmask 1043456
    %v44 = vsel %vm43, %v33, 0.0
    %v45 = vsel %vm43, %v39, 0.0
    %v46 = vadd.f32 %v44, %v45
    %47 = vadd.xlane.f32.xlu0 %v46
    %v48 = vpop.xlane.xlu0 %47
    %v49 = vsel %vm43, %v34, 0.0
    %v50 = vsel %vm43, %v40, 0.0
    %v51 = vadd.f32 %v49, %v50
    %52 = vadd.xlane.f32.xlu0 %v51
    %v53 = vpop.xlane.xlu0 %52
    %v54 = vmul.f32 %v33, %v33
    %v55 = vmul.f32 %v34, %v34
    %v58 = vcombine.high %v54, %v54
    %v59 = vcombine.high %v55, %v55
    %v62 = vsel %vm43, %v54, 0.0
    %v63 = vsel %vm43, %v58, 0.0
    %v64 = vadd.f32 %v62, %v63
    %65 = vadd.xlane.f32.xlu0 %v64
    %v66 = vpop.xlane.xlu0 %65
    %v67 = vsel %vm43, %v55, 0.0
    %v68 = vsel %vm43, %v59, 0.0
    %v69 = vadd.f32 %v67, %v68
    %70 = vadd.xlane.f32.xlu0 %v69
    %v71 = vpop.xlane.xlu0 %70
    %v72 = vmul.f32 %v48, 0.00390625
    %v73 = vmul.f32 %v53, 0.00390625
    %v74 = vmul.f32 %v66, 0.00390625
    %v75 = vmul.f32 %v71, 0.00390625
    %v76 = vmul.f32 %v72, %v72
    %v77 = vmul.f32 %v73, %v73
    %v78 = vsub.f32 %v74, %v76
    %v79 = vsub.f32 %v75, %v77
    %v80 = vmax.f32 %v78, 0.0
    %v81 = vmax.f32 %v79, 0.0
    %v82 = vsel %vm43, %v48, 0.0
    %v83 = vsel %vm43, %v53, 0.0
    %v84 = vadd.f32 %v82, %v83
    %v85 = vmul.f32 %v84, 0.001953125
    %v86 = vsel %vm43, %v66, 0.0
    %v87 = vsel %vm43, %v71, 0.0
    %v88 = vadd.f32 %v86, %v87
    %v89 = vmul.f32 %v88, 0.001953125
    %v90 = vmul.f32 %v85, %v85
    %v91 = vsub.f32 %v89, %v90
    %v92 = vmax.f32 %v91, 0.0
    %v93 = vadd.f32 %v80, 1e-05
    %v94 = vadd.f32 %v81, 1e-05
    %v95 = vrsqrt.pop %v93
    %v96 = vrsqrt.pop %v94
    %v97 = vadd.f32 %v92, 1e-05
    %v98 = vrsqrt.pop %v97
    %v99 = vld [vmem:[%s2] sm:$0xf]
    %v100 = vld [vmem:[%s3] sm:$0xf]
    %v101 = vstv %s35
    %v102 = vmul.f32 %v101, %v98
    %v103 = vstv %s36
    %v104 = vmul.f32 %v103, %v95
    %v105 = vmul.f32 %v103, %v96
    %v106 = vadd.f32 %v102, %v104
    %v107 = vadd.f32 %v102, %v105
    %v108 = vmul.f32 %v99, %v106
    %v109 = vmul.f32 %v99, %v107
    %v110 = vmul.f32 %v102, %v85
    %v111 = vmul.f32 %v104, %v72
    %v112 = vmul.f32 %v105, %v73
    %v113 = vadd.f32 %v110, %v111
    %v114 = vadd.f32 %v110, %v112
    %v115 = vmul.f32 %v99, %v113
    %v116 = vmul.f32 %v99, %v114
    %v117 = vsub.f32 %v100, %v115
    %v118 = vsub.f32 %v100, %v116
    %120 = vset.pattern.permute.xlu0 0
    %121 = vperm.xlu0 %120, %v108
    %v122 = vpop.permute.xlu0 %121
    %124 = vset.pattern.permute.xlu0 0
    %125 = vperm.xlu0 %124, %v109
    %v126 = vpop.permute.xlu0 %125
    %v128 = vunpack.c.l.s4 839922192
    %v129 = vunpack.c.0.s8 %v128
    %v130 = vlaneseq
    %v131 = vshrl.u32 %v130, 7
    %v132 = vsub.s32 %v129, %v131
    %v133 = vrot.slane %v122, %v132
    %v135 = vunpack.c.l.s4 839922192
    %v136 = vunpack.c.0.s8 %v135
    %v137 = vlaneseq
    %v138 = vshrl.u32 %v137, 7
    %v139 = vsub.s32 %v136, %v138
    %v140 = vrot.slane %v126, %v139
    %v143 = vmul.f32 %v33, %v133
    %v144 = vmul.f32 %v34, %v140
    %146 = vset.pattern.permute.xlu0 0
    %147 = vperm.xlu0 %146, %v117
    %v148 = vpop.permute.xlu0 %147
    %150 = vset.pattern.permute.xlu0 0
    %151 = vperm.xlu0 %150, %v118
    %v152 = vpop.permute.xlu0 %151
    %v154 = vunpack.c.l.s4 839922192
    %v155 = vunpack.c.0.s8 %v154
    %v156 = vlaneseq
    %v157 = vshrl.u32 %v156, 7
    %v158 = vsub.s32 %v155, %v157
    %v159 = vrot.slane %v148, %v158
    %v161 = vunpack.c.l.s4 839922192
    %v162 = vunpack.c.0.s8 %v161
    %v163 = vlaneseq
    %v164 = vshrl.u32 %v163, 7
    %v165 = vsub.s32 %v162, %v164
    %v166 = vrot.slane %v152, %v165
    %v169 = vadd.f32 %v143, %v159
    %v170 = vadd.f32 %v144, %v166
    %171 = vst [vmem:[#allocation6] sm:$0xff] %v169
    %172 = vst [vmem:[#allocation6 + $0x8] sm:$0xff] %v170
    // Predicated region
    $region22: #{tpu_custom_call.1} parent=1 // pred_check
      _
    $region23: #{tpu_custom_call.1} parent=1 // pred_check_branch
      %174 = sbr.rel (0) target = $region25
    $region24: #{tpu_custom_call.1} parent=1 // pred_region
      %s176 = ssub.s32 256, 256
      %177 = vsyncadd [#allocation5], %s176
      %s178 = sshll.u32 [#allocation6], 4
      %s179 = int_to_ptr.vmem [resolvable:$true] %s178
      %184 = dma.vmem_to_hbm [thread:$0]  %s179, 256, %s4, [#allocation5], 128, 128, 8
    $region25: #{tpu_custom_call.1} parent=1 // pred_fallthru
      _
    // Predicated region
    $region26: #{tpu_custom_call.1} parent=1 // pred_check
      _
    $region27: #{tpu_custom_call.1} parent=1 // pred_check_branch
      %186 = sbr.rel (0) target = $region29
    $region28: #{tpu_custom_call.1} parent=1 // pred_region
      %187 = dma.done [#allocation5], 256
    $region29: #{tpu_custom_call.1} parent=1 // pred_fallthru
      _
    %188 = vsyncpa [#allocation4], 1
    %189 = vsyncpa [#allocation5], 1

</llo_original>
